<compile_context>
chip_gen: v5e
topology: v5e:2x2
jax: 0.10.0
libtpu: 0.0.40
codegen_flags: <defaults>
</compile_context>

<pallas_src>
import math

import jax
import jax.numpy as jnp
from jax.experimental import pallas as pl
from jax.experimental.pallas import tpu as pltpu


HIDDEN = 512
LANE = 128
SUBLANE = 8
NEG_SLOPE = 0.1  # matches F.leaky_relu(x, 0.1) in the PyTorch module


def _round_up(x, m):
    return ((x + m - 1) // m) * m


def dqn_kernel(x_ref, w1_ref, b1_ref, w2_ref, b2_ref, w3_ref, b3_ref, o_ref):
    # Layer 1: (bb, n_obs)bf16 @ (n_obs, 512)bf16 -> f32, + (1, 512)f32
    h = jnp.dot(x_ref[...], w1_ref[...], preferred_element_type=jnp.float32)
    h = h + b1_ref[...]
    h = jnp.maximum(h, NEG_SLOPE * h)          # leaky_relu(0.1)

    # Layer 2: (bb, 512)bf16 @ (512, 512)bf16 -> f32, + (1, 512)f32
    h = jnp.dot(h.astype(jnp.bfloat16), w2_ref[...],
                preferred_element_type=jnp.float32)
    h = h + b2_ref[...]
    h = jnp.maximum(h, NEG_SLOPE * h)          # leaky_relu(0.1)

    # Output layer: (bb, 512)bf16 @ (512, n_act_pad)bf16 -> f32, + bias
    out = jnp.dot(h.astype(jnp.bfloat16), w3_ref[...],
                  preferred_element_type=jnp.float32)
    out = out + b3_ref[...]
    o_ref[...] = out.astype(o_ref.dtype)


def dqn_forward(x, params, *, block_b=256):
    """x: (B, n_observations) f32.  Returns (B, n_actions) f32."""
    w1, b1, w2, b2, w3, b3 = params
    B, n_obs = x.shape
    n_actions = w3.shape[1]

    # Lane-dense padded output width; sliced off in the wrapper.
    n_act_p = _round_up(max(n_actions, LANE), LANE)

    # Batch block: multiple of the sublane count; tile large batches so the
    # "parallel" grid axis can amortize weight DMA / split across v7x cores.
    bb = min(block_b, _round_up(B, SUBLANE))
    B_p = _round_up(B, bb)
    grid = (B_p // bb,)

    # bf16 inputs to the MXU; biases stay f32 (added to the f32 accumulator).
    x_p = jnp.zeros((B_p, n_obs), jnp.bfloat16).at[:B].set(x.astype(jnp.bfloat16))
    w1b = w1.astype(jnp.bfloat16)
    w2b = w2.astype(jnp.bfloat16)
    w3p = (jnp.zeros((HIDDEN, n_act_p), jnp.bfloat16)
           .at[:, :n_actions].set(w3.astype(jnp.bfloat16)))
    b3p = jnp.zeros((1, n_act_p), jnp.float32).at[:, :n_actions].set(b3)

    out = pl.pallas_call(
        dqn_kernel,
        out_shape=jax.ShapeDtypeStruct((B_p, n_act_p), jnp.float32),
        grid=grid,
        in_specs=[
            pl.BlockSpec((bb, n_obs), lambda i: (i, 0)),      # x: tiled on batch
            pl.BlockSpec(w1b.shape, lambda i: (0, 0)),         # weights resident
            pl.BlockSpec(b1.shape, lambda i: (0, 0)),
            pl.BlockSpec(w2b.shape, lambda i: (0, 0)),
            pl.BlockSpec(b2.shape, lambda i: (0, 0)),
            pl.BlockSpec(w3p.shape, lambda i: (0, 0)),
            pl.BlockSpec(b3p.shape, lambda i: (0, 0)),
        ],
        out_specs=pl.BlockSpec((bb, n_act_p), lambda i: (i, 0)),
        compiler_params=pltpu.CompilerParams(
            dimension_semantics=("parallel",),
            vmem_limit_bytes=8 << 20,  # ~1.5 MiB actually resident; headroom on v7x
        ),
    )(x_p, w1b, b1, w2b, b2, w3p, b3p)

    return out[:B, :n_actions]


def init_params(key, n_observations, n_actions):
    """Deterministic init matching nn.Linear's U(-1/sqrt(fan_in), 1/sqrt(fan_in))."""
    def linear(key, fan_in, fan_out):
        kw, kb = jax.random.split(key)
        bound = 1.0 / math.sqrt(fan_in)
        w = jax.random.uniform(kw, (fan_in, fan_out), jnp.float32, -bound, bound)
        b = jax.random.uniform(kb, (1, fan_out), jnp.float32, -bound, bound)
        return w, b

    k1, k2, k3 = jax.random.split(key, 3)
    w1, b1 = linear(k1, n_observations, HIDDEN)
    w2, b2 = linear(k2, HIDDEN, HIDDEN)
    w3, b3 = linear(k3, HIDDEN, n_actions)
    return (w1, b1, w2, b2, w3, b3)


def dqn_reference(x, params):
    """Pure-JAX f32 reference for verification."""
    w1, b1, w2, b2, w3, b3 = params
    h = x @ w1 + b1
    h = jnp.where(h > 0, h, NEG_SLOPE * h)
    h = h @ w2 + b2
    h = jnp.where(h > 0, h, NEG_SLOPE * h)
    return h @ w3 + b3


if __name__ == "__main__":
    n_observations = 16
    n_actions = 8
    batch = 8

    key = jax.random.PRNGKey(0)
    k_params, k_x = jax.random.split(key)

    params = init_params(k_params, n_observations, n_actions)
    x = jax.random.normal(k_x, (batch, n_observations), jnp.float32)

    out = dqn_forward(x, params)
    out = jax.block_until_ready(out)

    ref = dqn_reference(x, params)
    assert out.shape == (batch, n_actions)
    # Kernel uses bf16 weights/activations into the MXU, so compare with a
    # tolerance that accommodates bf16 rounding vs the f32 reference.
    assert jnp.allclose(out, ref, atol=5e-2, rtol=5e-2), "mismatch vs reference"

    print("KERNEL_OK")
</pallas_src>

<mosaic_0001>
module attributes {stable_mosaic.version = 11 : i64} {
  func.func @dqn_kernel(%arg0: i32, %arg1: memref<8x16xbf16, #tpu.memory_space<vmem>>, %arg2: memref<16x512xbf16, #tpu.memory_space<vmem>>, %arg3: memref<1x512xf32, #tpu.memory_space<vmem>>, %arg4: memref<512x512xbf16, #tpu.memory_space<vmem>>, %arg5: memref<1x512xf32, #tpu.memory_space<vmem>>, %arg6: memref<512x128xbf16, #tpu.memory_space<vmem>>, %arg7: memref<1x128xf32, #tpu.memory_space<vmem>>, %arg8: memref<8x128xf32, #tpu.memory_space<vmem>>) attributes {dimension_semantics = [#tpu.dimension_semantics<parallel>], iteration_bounds = array<i64: 1>, scalar_prefetch = 0 : i64, scratch_operands = 0 : i64, tpu.core_type = #tpu.core_type<tc>, window_params = [{transform_indices = @transform_0, window_bounds = array<i64: 8, 16>}, {pipeline_mode = #tpu.pipeline_mode<synchronous>, transform_indices = @transform_1, window_bounds = array<i64: 16, 512>}, {pipeline_mode = #tpu.pipeline_mode<synchronous>, transform_indices = @transform_2, window_bounds = array<i64: 1, 512>}, {pipeline_mode = #tpu.pipeline_mode<synchronous>, transform_indices = @transform_3, window_bounds = array<i64: 512, 512>}, {pipeline_mode = #tpu.pipeline_mode<synchronous>, transform_indices = @transform_4, window_bounds = array<i64: 1, 512>}, {pipeline_mode = #tpu.pipeline_mode<synchronous>, transform_indices = @transform_5, window_bounds = array<i64: 512, 128>}, {pipeline_mode = #tpu.pipeline_mode<synchronous>, transform_indices = @transform_6, window_bounds = array<i64: 1, 128>}, {transform_indices = @transform_7, window_bounds = array<i64: 8, 128>}]} {
    %c0 = arith.constant 0 : index
    %c0_0 = arith.constant 0 : index
    %0 = vector.load %arg1[%c0, %c0_0] : memref<8x16xbf16, #tpu.memory_space<vmem>>, vector<8x16xbf16>
    %c0_1 = arith.constant 0 : index
    %c0_2 = arith.constant 0 : index
    %1 = vector.load %arg2[%c0_1, %c0_2] : memref<16x512xbf16, #tpu.memory_space<vmem>>, vector<16x512xbf16>
    %cst = arith.constant dense<0.000000e+00> : vector<8x512xf32>
    %2 = tpu.matmul %0, %1, %cst {dimension_numbers = #tpu.dot_dimension_numbers<[1], [0], [0], [1], [0, 0, 1, 1], [], []>} : vector<8x16xbf16>, vector<16x512xbf16>, vector<8x512xf32> -> vector<8x512xf32>
    %c0_3 = arith.constant 0 : index
    %c0_4 = arith.constant 0 : index
    %3 = vector.load %arg3[%c0_3, %c0_4] : memref<1x512xf32, #tpu.memory_space<vmem>>, vector<1x512xf32>
    %4 = vector.broadcast %3 : vector<1x512xf32> to vector<8x512xf32>
    %5 = arith.addf %2, %4 : vector<8x512xf32>
    %cst_5 = arith.constant 1.000000e-01 : f32
    %6 = vector.broadcast %cst_5 : f32 to vector<8x512xf32>
    %7 = arith.mulf %6, %5 : vector<8x512xf32>
    %8 = arith.maximumf %5, %7 : vector<8x512xf32>
    %9 = arith.truncf %8 : vector<8x512xf32> to vector<8x512xbf16>
    %c0_6 = arith.constant 0 : index
    %c0_7 = arith.constant 0 : index
    %10 = vector.load %arg4[%c0_6, %c0_7] : memref<512x512xbf16, #tpu.memory_space<vmem>>, vector<512x512xbf16>
    %cst_8 = arith.constant dense<0.000000e+00> : vector<8x512xf32>
    %11 = tpu.matmul %9, %10, %cst_8 {dimension_numbers = #tpu.dot_dimension_numbers<[1], [0], [0], [1], [0, 0, 1, 1], [], []>} : vector<8x512xbf16>, vector<512x512xbf16>, vector<8x512xf32> -> vector<8x512xf32>
    %c0_9 = arith.constant 0 : index
    %c0_10 = arith.constant 0 : index
    %12 = vector.load %arg5[%c0_9, %c0_10] : memref<1x512xf32, #tpu.memory_space<vmem>>, vector<1x512xf32>
    %13 = vector.broadcast %12 : vector<1x512xf32> to vector<8x512xf32>
    %14 = arith.addf %11, %13 : vector<8x512xf32>
    %cst_11 = arith.constant 1.000000e-01 : f32
    %15 = vector.broadcast %cst_11 : f32 to vector<8x512xf32>
    %16 = arith.mulf %15, %14 : vector<8x512xf32>
    %17 = arith.maximumf %14, %16 : vector<8x512xf32>
    %18 = arith.truncf %17 : vector<8x512xf32> to vector<8x512xbf16>
    %c0_12 = arith.constant 0 : index
    %c0_13 = arith.constant 0 : index
    %19 = vector.load %arg6[%c0_12, %c0_13] : memref<512x128xbf16, #tpu.memory_space<vmem>>, vector<512x128xbf16>
    %cst_14 = arith.constant dense<0.000000e+00> : vector<8x128xf32>
    %20 = tpu.matmul %18, %19, %cst_14 {dimension_numbers = #tpu.dot_dimension_numbers<[1], [0], [0], [1], [0, 0, 1, 1], [], []>} : vector<8x512xbf16>, vector<512x128xbf16>, vector<8x128xf32> -> vector<8x128xf32>
    %c0_15 = arith.constant 0 : index
    %c0_16 = arith.constant 0 : index
    %21 = vector.load %arg7[%c0_15, %c0_16] : memref<1x128xf32, #tpu.memory_space<vmem>>, vector<1x128xf32>
    %22 = vector.broadcast %21 : vector<1x128xf32> to vector<8x128xf32>
    %23 = arith.addf %20, %22 : vector<8x128xf32>
    %c0_17 = arith.constant 0 : index
    %c0_18 = arith.constant 0 : index
    %24 = vector.load %arg8[%c0_17, %c0_18] : memref<8x128xf32, #tpu.memory_space<vmem>>, vector<8x128xf32>
    tpu.vector_store %arg8[%c0_17, %c0_18], %23 {strides = array<i32>} : memref<8x128xf32, #tpu.memory_space<vmem>>, vector<8x128xf32>,
    return
  }
  func.func @transform_0(%arg0: i32) -> (i32, i32) {
    %c0_i32 = arith.constant 0 : i32
    %c0_i32_0 = arith.constant 0 : i32
    return %arg0, %c0_i32 : i32, i32
  }
  func.func @transform_1(%arg0: i32) -> (i32, i32) {
    %c0_i32 = arith.constant 0 : i32
    %c0_i32_0 = arith.constant 0 : i32
    %c0_i32_1 = arith.constant 0 : i32
    return %c0_i32, %c0_i32_0 : i32, i32
  }
  func.func @transform_2(%arg0: i32) -> (i32, i32) {
    %c0_i32 = arith.constant 0 : i32
    %c0_i32_0 = arith.constant 0 : i32
    %c0_i32_1 = arith.constant 0 : i32
    return %c0_i32, %c0_i32_0 : i32, i32
  }
  func.func @transform_3(%arg0: i32) -> (i32, i32) {
    %c0_i32 = arith.constant 0 : i32
    %c0_i32_0 = arith.constant 0 : i32
    %c0_i32_1 = arith.constant 0 : i32
    return %c0_i32, %c0_i32_0 : i32, i32
  }
  func.func @transform_4(%arg0: i32) -> (i32, i32) {
    %c0_i32 = arith.constant 0 : i32
    %c0_i32_0 = arith.constant 0 : i32
    %c0_i32_1 = arith.constant 0 : i32
    return %c0_i32, %c0_i32_0 : i32, i32
  }
  func.func @transform_5(%arg0: i32) -> (i32, i32) {
    %c0_i32 = arith.constant 0 : i32
    %c0_i32_0 = arith.constant 0 : i32
    %c0_i32_1 = arith.constant 0 : i32
    return %c0_i32, %c0_i32_0 : i32, i32
  }
  func.func @transform_6(%arg0: i32) -> (i32, i32) {
    %c0_i32 = arith.constant 0 : i32
    %c0_i32_0 = arith.constant 0 : i32
    %c0_i32_1 = arith.constant 0 : i32
    return %c0_i32, %c0_i32_0 : i32, i32
  }
  func.func @transform_7(%arg0: i32) -> (i32, i32) {
    %c0_i32 = arith.constant 0 : i32
    %c0_i32_0 = arith.constant 0 : i32
    return %arg0, %c0_i32 : i32, i32
  }
}

</mosaic_0001>

<llo_original>
// kernel: tpu_custom_call.1
$region0: #{tpu_custom_call.1}
  #allocation0 [shape = 'u32[]', space=smem, size = 0x4, offset = 0x4, fixed_abs, tag = 'smem constant byte address 0x4 - core index']
  #allocation1 [shape = 'u32[72,128]{1,0:T(1,128)}', space=vmem, size = 0x9000, scoped, tag = 'internal scratch']
  %s0 = inlined_call_operand.hbm [shape: bf16[8,16], index: 0, kind: input, shape index: {}]
  %s1 = inlined_call_operand.hbm [shape: bf16[16,512], index: 1, kind: input, shape index: {}]
  %s2 = inlined_call_operand.hbm [shape: f32[1,512], index: 2, kind: input, shape index: {}]
  %s3 = inlined_call_operand.hbm [shape: bf16[512,512], index: 3, kind: input, shape index: {}]
  %s4 = inlined_call_operand.hbm [shape: f32[1,512], index: 4, kind: input, shape index: {}]
  %s5 = inlined_call_operand.hbm [shape: bf16[512,128], index: 5, kind: input, shape index: {}]
  %s6 = inlined_call_operand.vmem [shape: f32[1,128], index: 6, kind: input, shape index: {}]
  %s7 = inlined_call_operand.hbm [shape: f32[8,128], index: 7, kind: output, shape index: {}]
  %s8 = sld [smem:[#allocation0]]
  $region62: #{tpu_custom_call.1} parent=0
    _
  %s10 = ssub.s32 1, %s8
  %s11 = scalar_select 0, %s10, %s8
  $region1: #{tpu_custom_call.1} parent=0
    #allocation2 [shape = 'u8[2048]{0}', space=vmem, size = 0x800, scoped, tag = 'input window, operand 0, single buffered']
    #allocation3 [shape = 's32[1]{0}', space=sflag, size = 0x4, scoped, tag = 'scoped memory for tpu_custom_call.1']
    #allocation4 [shape = 's32[1]{0}', space=sflag, size = 0x4, scoped, tag = 'scoped memory for tpu_custom_call.1']
    #allocation5 [shape = 'u8[16384]{0}', space=vmem, size = 0x4000, scoped, tag = 'input window, operand 1, single buffered']
    #allocation6 [shape = 's32[1]{0}', space=sflag, size = 0x4, scoped, tag = 'scoped memory for tpu_custom_call.1']
    #allocation7 [shape = 'u8[2048]{0}', space=vmem, size = 0x800, scoped, tag = 'input window, operand 2, single buffered']
    #allocation8 [shape = 'u8[524288]{0}', space=vmem, size = 0x80000, scoped, tag = 'input window, operand 3, single buffered']
    #allocation9 [shape = 's32[1]{0}', space=sflag, size = 0x4, scoped, tag = 'scoped memory for tpu_custom_call.1']
    #allocation10 [shape = 'u8[2048]{0}', space=vmem, size = 0x800, scoped, tag = 'input window, operand 4, single buffered']
    #allocation11 [shape = 'u8[131072]{0}', space=vmem, size = 0x20000, scoped, tag = 'input window, operand 5, single buffered']
    #allocation12 [shape = 's32[1]{0}', space=sflag, size = 0x4, scoped, tag = 'scoped memory for tpu_custom_call.1']
    #allocation13 [shape = 'u8[4096]{0}', space=vmem, size = 0x1000, scoped, tag = 'output window, operand 0, single buffered']
    %12 = vsyncpa [#allocation3], 0
    %13 = vsyncpa [#allocation6], 0
    %14 = vsyncpa [#allocation9], 0
    %15 = vsyncpa [#allocation12], 0
    %16 = vsyncpa [#allocation4], 0
    // Predicated region
    $region2: #{tpu_custom_call.1} parent=1 // pred_check
      _
    $region3: #{tpu_custom_call.1} parent=1 // pred_check_branch
      %18 = sbr.rel (0) target = $region5
    $region4: #{tpu_custom_call.1} parent=1 // pred_region
      %20 = vsyncadd [#allocation3], 0
      %s22 = sshll.u32 %s0, 4
      %s23 = int_to_ptr.hbm [resolvable:$true] %s22
      %s24 = sshll.u32 [#allocation2], 4
      %s25 = int_to_ptr.vmem [resolvable:$true] %s24
      %27 = dma.hbm_to_vmem [thread:$0]  %s23, 64, %s25, [#allocation3]
    $region5: #{tpu_custom_call.1} parent=1 // pred_fallthru
      _
    // Predicated region
    $region6: #{tpu_custom_call.1} parent=1 // pred_check
      _
    $region7: #{tpu_custom_call.1} parent=1 // pred_check_branch
      %29 = sbr.rel (0) target = $region9
    $region8: #{tpu_custom_call.1} parent=1 // pred_region
      %31 = vsyncadd [#allocation6], 0
      %s32 = sshll.u32 %s1, 4
      %s33 = int_to_ptr.hbm [resolvable:$true] %s32
      %s34 = sshll.u32 [#allocation5], 4
      %s35 = int_to_ptr.vmem [resolvable:$true] %s34
      %40 = dma.hbm_to_vmem [thread:$0]  %s33, 512, %s35, [#allocation6], 256, 256, 16
    $region9: #{tpu_custom_call.1} parent=1 // pred_fallthru
      _
    // Predicated region
    $region10: #{tpu_custom_call.1} parent=1 // pred_check
      _
    $region11: #{tpu_custom_call.1} parent=1 // pred_check_branch
      %42 = sbr.rel (0) target = $region13
    $region12: #{tpu_custom_call.1} parent=1 // pred_region
      %44 = vsyncadd [#allocation6], 0
      %s46 = sshll.u32 %s2, 4
      %s47 = int_to_ptr.hbm [resolvable:$true] %s46
      %s48 = sshll.u32 [#allocation7], 4
      %s49 = int_to_ptr.vmem [resolvable:$true] %s48
      %51 = dma.hbm_to_vmem [thread:$0]  %s47, 64, %s49, [#allocation6]
    $region13: #{tpu_custom_call.1} parent=1 // pred_fallthru
      _
    // Predicated region
    $region14: #{tpu_custom_call.1} parent=1 // pred_check
      _
    $region15: #{tpu_custom_call.1} parent=1 // pred_check_branch
      %53 = sbr.rel (0) target = $region17
    $region16: #{tpu_custom_call.1} parent=1 // pred_region
      %55 = vsyncadd [#allocation9], 0
      %s56 = sshll.u32 %s3, 4
      %s57 = int_to_ptr.hbm [resolvable:$true] %s56
      %s58 = sshll.u32 [#allocation8], 4
      %s59 = int_to_ptr.vmem [resolvable:$true] %s58
      %64 = dma.hbm_to_vmem [thread:$0]  %s57, 16384, %s59, [#allocation9], 256, 256, 16
    $region17: #{tpu_custom_call.1} parent=1 // pred_fallthru
      _
    // Predicated region
    $region18: #{tpu_custom_call.1} parent=1 // pred_check
      _
    $region19: #{tpu_custom_call.1} parent=1 // pred_check_branch
      %66 = sbr.rel (0) target = $region21
    $region20: #{tpu_custom_call.1} parent=1 // pred_region
      %68 = vsyncadd [#allocation9], 0
      %s70 = sshll.u32 %s4, 4
      %s71 = int_to_ptr.hbm [resolvable:$true] %s70
      %s72 = sshll.u32 [#allocation10], 4
      %s73 = int_to_ptr.vmem [resolvable:$true] %s72
      %75 = dma.hbm_to_vmem [thread:$0]  %s71, 64, %s73, [#allocation9]
    $region21: #{tpu_custom_call.1} parent=1 // pred_fallthru
      _
    // Predicated region
    $region22: #{tpu_custom_call.1} parent=1 // pred_check
      _
    $region23: #{tpu_custom_call.1} parent=1 // pred_check_branch
      %77 = sbr.rel (0) target = $region25
    $region24: #{tpu_custom_call.1} parent=1 // pred_region
      %79 = vsyncadd [#allocation12], 0
      %s80 = sshll.u32 %s5, 4
      %s81 = int_to_ptr.hbm [resolvable:$true] %s80
      %s82 = sshll.u32 [#allocation11], 4
      %s83 = int_to_ptr.vmem [resolvable:$true] %s82
      %88 = dma.hbm_to_vmem [thread:$0]  %s81, 4096, %s83, [#allocation12], 64, 64, 4
    $region25: #{tpu_custom_call.1} parent=1 // pred_fallthru
      _
    // Predicated region
    $region26: #{tpu_custom_call.1} parent=1 // pred_check
      _
    $region27: #{tpu_custom_call.1} parent=1 // pred_check_branch
      %90 = sbr.rel (0) target = $region29
    $region28: #{tpu_custom_call.1} parent=1 // pred_region
      _
    $region29: #{tpu_custom_call.1} parent=1 // pred_fallthru
      _
    // Predicated region
    $region30: #{tpu_custom_call.1} parent=1 // pred_check
      _
    $region31: #{tpu_custom_call.1} parent=1 // pred_check_branch
      %92 = sbr.rel (0) target = $region33
    $region32: #{tpu_custom_call.1} parent=1 // pred_region
      %94 = dma.done [#allocation3], 64
    $region33: #{tpu_custom_call.1} parent=1 // pred_fallthru
      _
    // Predicated region
    $region34: #{tpu_custom_call.1} parent=1 // pred_check
      _
    $region35: #{tpu_custom_call.1} parent=1 // pred_check_branch
      %96 = sbr.rel (0) target = $region37
    $region36: #{tpu_custom_call.1} parent=1 // pred_region
      %98 = dma.done [#allocation6], 512
    $region37: #{tpu_custom_call.1} parent=1 // pred_fallthru
      _
    // Predicated region
    $region38: #{tpu_custom_call.1} parent=1 // pred_check
      _
    $region39: #{tpu_custom_call.1} parent=1 // pred_check_branch
      %100 = sbr.rel (0) target = $region41
    $region40: #{tpu_custom_call.1} parent=1 // pred_region
      %102 = dma.done [#allocation6], 64
    $region41: #{tpu_custom_call.1} parent=1 // pred_fallthru
      _
    // Predicated region
    $region42: #{tpu_custom_call.1} parent=1 // pred_check
      _
    $region43: #{tpu_custom_call.1} parent=1 // pred_check_branch
      %104 = sbr.rel (0) target = $region45
    $region44: #{tpu_custom_call.1} parent=1 // pred_region
      %106 = dma.done [#allocation9], 16384
    $region45: #{tpu_custom_call.1} parent=1 // pred_fallthru
      _
    // Predicated region
    $region46: #{tpu_custom_call.1} parent=1 // pred_check
      _
    $region47: #{tpu_custom_call.1} parent=1 // pred_check_branch
      %108 = sbr.rel (0) target = $region49
    $region48: #{tpu_custom_call.1} parent=1 // pred_region
      %110 = dma.done [#allocation9], 64
    $region49: #{tpu_custom_call.1} parent=1 // pred_fallthru
      _
    // Predicated region
    $region50: #{tpu_custom_call.1} parent=1 // pred_check
      _
    $region51: #{tpu_custom_call.1} parent=1 // pred_check_branch
      %112 = sbr.rel (0) target = $region53
    $region52: #{tpu_custom_call.1} parent=1 // pred_region
      %114 = dma.done [#allocation12], 4096
    $region53: #{tpu_custom_call.1} parent=1 // pred_fallthru
      _
    %v116 = vld [vmem:[#allocation2] sm:$0xf]
    %v117 = vld [vmem:[#allocation5] sm:$0xff]
    %v118 = vld [vmem:[#allocation5 + $0x8] sm:$0xff]
    %v119 = vld [vmem:[#allocation5 + $0x10] sm:$0xff]
    %v120 = vld [vmem:[#allocation5 + $0x18] sm:$0xff]
    %v121 = vld [vmem:[#allocation7] sm:$0xf]
    %v123 = vperm.slane %v121, 0
    %v124 = vperm.slane %v121, 1
    %v125 = vperm.slane %v121, 2
    %v126 = vperm.slane %v121, 3
    %v135 = vunpack.c.l.b16 %v117
    %v136 = vunpack.c.h.b16 %v117
    %v137 = vunpack.c.l.b16 %v118
    %v138 = vunpack.c.h.b16 %v118
    %v139 = vunpack.c.l.b16 %v119
    %v140 = vunpack.c.h.b16 %v119
    %v141 = vunpack.c.l.b16 %v120
    %v142 = vunpack.c.h.b16 %v120
    %v143 = vpack.c.b16 %v139, %v135
    %v144 = vpack.c.b16 %v140, %v136
    %v145 = vpack.c.b16 %v141, %v137
    %v146 = vpack.c.b16 %v142, %v138
    %vm151 = vcmask 130048
    %v153 = vsel %vm151, %v116, 0
    %155 = vmatpush.bf16.msra.mxu0 0
    %156 = vmatpush.bf16.msra.mxu0 0
    %157 = vmatpush.bf16.msra.mxu0 0
    %158 = vmatpush.bf16.msra.mxu0 0
    %159 = vmatpush.bf16.msra.mxu0 0
    %160 = vmatpush.bf16.msra.mxu0 0
    %161 = vmatpush.bf16.msra.mxu0 0
    %162 = vmatpush.bf16.msra.mxu0 %v143
    %163 = vmatmul.bf16.gmra.mxu0 %v153
    %v164 = vpop.f32.mrf.mxu0
    %v165 = vadd.f32 %v123, %v164
    %v166 = vpop.f32.mrf.mxu0
    %167 = vdwg.mxu0
    %168 = vmatpush.bf16.msra.mxu0 0
    %169 = vmatpush.bf16.msra.mxu0 0
    %170 = vmatpush.bf16.msra.mxu0 0
    %171 = vmatpush.bf16.msra.mxu0 0
    %172 = vmatpush.bf16.msra.mxu0 0
    %173 = vmatpush.bf16.msra.mxu0 0
    %174 = vmatpush.bf16.msra.mxu0 0
    %175 = vmatpush.bf16.msra.mxu0 %v144
    %176 = vmatmul.bf16.gmra.mxu0 %v153
    %v177 = vpop.f32.mrf.mxu0
    %v178 = vadd.f32 %v124, %v177
    %v179 = vpop.f32.mrf.mxu0
    %180 = vdwg.mxu0
    %181 = vmatpush.bf16.msra.mxu0 0
    %182 = vmatpush.bf16.msra.mxu0 0
    %183 = vmatpush.bf16.msra.mxu0 0
    %184 = vmatpush.bf16.msra.mxu0 0
    %185 = vmatpush.bf16.msra.mxu0 0
    %186 = vmatpush.bf16.msra.mxu0 0
    %187 = vmatpush.bf16.msra.mxu0 0
    %188 = vmatpush.bf16.msra.mxu0 %v145
    %189 = vmatmul.bf16.gmra.mxu0 %v153
    %v190 = vpop.f32.mrf.mxu0
    %v191 = vadd.f32 %v125, %v190
    %v192 = vpop.f32.mrf.mxu0
    %193 = vdwg.mxu0
    %194 = vmatpush.bf16.msra.mxu0 0
    %195 = vmatpush.bf16.msra.mxu0 0
    %196 = vmatpush.bf16.msra.mxu0 0
    %197 = vmatpush.bf16.msra.mxu0 0
    %198 = vmatpush.bf16.msra.mxu0 0
    %199 = vmatpush.bf16.msra.mxu0 0
    %200 = vmatpush.bf16.msra.mxu0 0
    %201 = vmatpush.bf16.msra.mxu0 %v146
    %202 = vmatmul.bf16.gmra.mxu0 %v153
    %v203 = vpop.f32.mrf.mxu0
    %v204 = vadd.f32 %v126, %v203
    %v205 = vpop.f32.mrf.mxu0
    %206 = vdwg.mxu0
    %v207 = vmul.f32 %v165, 0.1
    %v208 = vmul.f32 %v178, 0.1
    %v209 = vmul.f32 %v191, 0.1
    %v210 = vmul.f32 %v204, 0.1
    %v211 = vmax.f32 %v165, %v207
    %v212 = vmax.f32 %v178, %v208
    %v213 = vmax.f32 %v191, %v209
    %v214 = vmax.f32 %v204, %v210
    %v215 = vpack.c.bf16 %v211, %v211
    %v216 = vpack.c.bf16 %v212, %v212
    %v217 = vpack.c.bf16 %v213, %v213
    %v218 = vpack.c.bf16 %v214, %v214
    %v219 = vld [vmem:[#allocation8] sm:$0xff]
    %v220 = vld [vmem:[#allocation8 + $0x8] sm:$0xff]
    %v221 = vld [vmem:[#allocation8 + $0x10] sm:$0xff]
    %v222 = vld [vmem:[#allocation8 + $0x18] sm:$0xff]
    %v223 = vld [vmem:[#allocation8 + $0x20] sm:$0xff]
    %v224 = vld [vmem:[#allocation8 + $0x28] sm:$0xff]
    %v225 = vld [vmem:[#allocation8 + $0x30] sm:$0xff]
    %v226 = vld [vmem:[#allocation8 + $0x38] sm:$0xff]
    %v227 = vld [vmem:[#allocation8 + $0x40] sm:$0xff]
    %v228 = vld [vmem:[#allocation8 + $0x48] sm:$0xff]
    %v229 = vld [vmem:[#allocation8 + $0x50] sm:$0xff]
    %v230 = vld [vmem:[#allocation8 + $0x58] sm:$0xff]
    %v231 = vld [vmem:[#allocation8 + $0x60] sm:$0xff]
    %v232 = vld [vmem:[#allocation8 + $0x68] sm:$0xff]
    %v233 = vld [vmem:[#allocation8 + $0x70] sm:$0xff]
    %v234 = vld [vmem:[#allocation8 + $0x78] sm:$0xff]
    %v235 = vld [vmem:[#allocation8 + $0x80] sm:$0xff]
    %v236 = vld [vmem:[#allocation8 + $0x88] sm:$0xff]
    %v237 = vld [vmem:[#allocation8 + $0x90] sm:$0xff]
    %v238 = vld [vmem:[#allocation8 + $0x98] sm:$0xff]
    %v239 = vld [vmem:[#allocation8 + $0xa0] sm:$0xff]
    %v240 = vld [vmem:[#allocation8 + $0xa8] sm:$0xff]
    %v241 = vld [vmem:[#allocation8 + $0xb0] sm:$0xff]
    %v242 = vld [vmem:[#allocation8 + $0xb8] sm:$0xff]
    %v243 = vld [vmem:[#allocation8 + $0xc0] sm:$0xff]
    %v244 = vld [vmem:[#allocation8 + $0xc8] sm:$0xff]
    %v245 = vld [vmem:[#allocation8 + $0xd0] sm:$0xff]
    %v246 = vld [vmem:[#allocation8 + $0xd8] sm:$0xff]
    %v247 = vld [vmem:[#allocation8 + $0xe0] sm:$0xff]
    %v248 = vld [vmem:[#allocation8 + $0xe8] sm:$0xff]
    %v249 = vld [vmem:[#allocation8 + $0xf0] sm:$0xff]
    %v250 = vld [vmem:[#allocation8 + $0xf8] sm:$0xff]
    %v251 = vld [vmem:[#allocation8 + $0x100] sm:$0xff]
    %v252 = vld [vmem:[#allocation8 + $0x108] sm:$0xff]
    %v253 = vld [vmem:[#allocation8 + $0x110] sm:$0xff]
    %v254 = vld [vmem:[#allocation8 + $0x118] sm:$0xff]
    %v255 = vld [vmem:[#allocation8 + $0x120] sm:$0xff]
    %v256 = vld [vmem:[#allocation8 + $0x128] sm:$0xff]
    %v257 = vld [vmem:[#allocation8 + $0x130] sm:$0xff]
    %v258 = vld [vmem:[#allocation8 + $0x138] sm:$0xff]
    %v259 = vld [vmem:[#allocation8 + $0x140] sm:$0xff]
    %v260 = vld [vmem:[#allocation8 + $0x148] sm:$0xff]
    %v261 = vld [vmem:[#allocation8 + $0x150] sm:$0xff]
    %v262 = vld [vmem:[#allocation8 + $0x158] sm:$0xff]
    %v263 = vld [vmem:[#allocation8 + $0x160] sm:$0xff]
    %v264 = vld [vmem:[#allocation8 + $0x168] sm:$0xff]
    %v265 = vld [vmem:[#allocation8 + $0x170] sm:$0xff]
    %v266 = vld [vmem:[#allocation8 + $0x178] sm:$0xff]
    %v267 = vld [vmem:[#allocation8 + $0x180] sm:$0xff]
    %v268 = vld [vmem:[#allocation8 + $0x188] sm:$0xff]
    %v269 = vld [vmem:[#allocation8 + $0x190] sm:$0xff]
    %v270 = vld [vmem:[#allocation8 + $0x198] sm:$0xff]
    %v271 = vld [vmem:[#allocation8 + $0x1a0] sm:$0xff]
    %v272 = vld [vmem:[#allocation8 + $0x1a8] sm:$0xff]
    %v273 = vld [vmem:[#allocation8 + $0x1b0] sm:$0xff]
    %v274 = vld [vmem:[#allocation8 + $0x1b8] sm:$0xff]
    %v275 = vld [vmem:[#allocation8 + $0x1c0] sm:$0xff]
    %v276 = vld [vmem:[#allocation8 + $0x1c8] sm:$0xff]
    %v277 = vld [vmem:[#allocation8 + $0x1d0] sm:$0xff]
    %v278 = vld [vmem:[#allocation8 + $0x1d8] sm:$0xff]
    %v279 = vld [vmem:[#allocation8 + $0x1e0] sm:$0xff]
    %v280 = vld [vmem:[#allocation8 + $0x1e8] sm:$0xff]
    %v281 = vld [vmem:[#allocation8 + $0x1f0] sm:$0xff]
    %v282 = vld [vmem:[#allocation8 + $0x1f8] sm:$0xff]
    %v283 = vld [vmem:[#allocation8 + $0x200] sm:$0xff]
    %v284 = vld [vmem:[#allocation8 + $0x208] sm:$0xff]
    %v285 = vld [vmem:[#allocation8 + $0x210] sm:$0xff]
    %v286 = vld [vmem:[#allocation8 + $0x218] sm:$0xff]
    %v287 = vld [vmem:[#allocation8 + $0x220] sm:$0xff]
    %v288 = vld [vmem:[#allocation8 + $0x228] sm:$0xff]
    %v289 = vld [vmem:[#allocation8 + $0x230] sm:$0xff]
    %v290 = vld [vmem:[#allocation8 + $0x238] sm:$0xff]
    %v291 = vld [vmem:[#allocation8 + $0x240] sm:$0xff]
    %v292 = vld [vmem:[#allocation8 + $0x248] sm:$0xff]
    %v293 = vld [vmem:[#allocation8 + $0x250] sm:$0xff]
    %v294 = vld [vmem:[#allocation8 + $0x258] sm:$0xff]
    %v295 = vld [vmem:[#allocation8 + $0x260] sm:$0xff]
    %v296 = vld [vmem:[#allocation8 + $0x268] sm:$0xff]
    %v297 = vld [vmem:[#allocation8 + $0x270] sm:$0xff]
    %v298 = vld [vmem:[#allocation8 + $0x278] sm:$0xff]
    %v299 = vld [vmem:[#allocation8 + $0x280] sm:$0xff]
    %v300 = vld [vmem:[#allocation8 + $0x288] sm:$0xff]
    %v301 = vld [vmem:[#allocation8 + $0x290] sm:$0xff]
    %v302 = vld [vmem:[#allocation8 + $0x298] sm:$0xff]
    %v303 = vld [vmem:[#allocation8 + $0x2a0] sm:$0xff]
    %v304 = vld [vmem:[#allocation8 + $0x2a8] sm:$0xff]
    %v305 = vld [vmem:[#allocation8 + $0x2b0] sm:$0xff]
    %v306 = vld [vmem:[#allocation8 + $0x2b8] sm:$0xff]
    %v307 = vld [vmem:[#allocation8 + $0x2c0] sm:$0xff]
    %v308 = vld [vmem:[#allocation8 + $0x2c8] sm:$0xff]
    %v309 = vld [vmem:[#allocation8 + $0x2d0] sm:$0xff]
    %v310 = vld [vmem:[#allocation8 + $0x2d8] sm:$0xff]
    %v311 = vld [vmem:[#allocation8 + $0x2e0] sm:$0xff]
    %v312 = vld [vmem:[#allocation8 + $0x2e8] sm:$0xff]
    %v313 = vld [vmem:[#allocation8 + $0x2f0] sm:$0xff]
    %v314 = vld [vmem:[#allocation8 + $0x2f8] sm:$0xff]
    %v315 = vld [vmem:[#allocation8 + $0x300] sm:$0xff]
    %v316 = vld [vmem:[#allocation8 + $0x308] sm:$0xff]
    %v317 = vld [vmem:[#allocation8 + $0x310] sm:$0xff]
    %v318 = vld [vmem:[#allocation8 + $0x318] sm:$0xff]
    %v319 = vld [vmem:[#allocation8 + $0x320] sm:$0xff]
    %v320 = vld [vmem:[#allocation8 + $0x328] sm:$0xff]
    %v321 = vld [vmem:[#allocation8 + $0x330] sm:$0xff]
    %v322 = vld [vmem:[#allocation8 + $0x338] sm:$0xff]
    %v323 = vld [vmem:[#allocation8 + $0x340] sm:$0xff]
    %v324 = vld [vmem:[#allocation8 + $0x348] sm:$0xff]
    %v325 = vld [vmem:[#allocation8 + $0x350] sm:$0xff]
    %v326 = vld [vmem:[#allocation8 + $0x358] sm:$0xff]
    %v327 = vld [vmem:[#allocation8 + $0x360] sm:$0xff]
    %v328 = vld [vmem:[#allocation8 + $0x368] sm:$0xff]
    %v329 = vld [vmem:[#allocation8 + $0x370] sm:$0xff]
    %v330 = vld [vmem:[#allocation8 + $0x378] sm:$0xff]
    %v331 = vld [vmem:[#allocation8 + $0x380] sm:$0xff]
    %v332 = vld [vmem:[#allocation8 + $0x388] sm:$0xff]
    %v333 = vld [vmem:[#allocation8 + $0x390] sm:$0xff]
    %v334 = vld [vmem:[#allocation8 + $0x398] sm:$0xff]
    %v335 = vld [vmem:[#allocation8 + $0x3a0] sm:$0xff]
    %v336 = vld [vmem:[#allocation8 + $0x3a8] sm:$0xff]
    %v337 = vld [vmem:[#allocation8 + $0x3b0] sm:$0xff]
    %v338 = vld [vmem:[#allocation8 + $0x3b8] sm:$0xff]
    %v339 = vld [vmem:[#allocation8 + $0x3c0] sm:$0xff]
    %v340 = vld [vmem:[#allocation8 + $0x3c8] sm:$0xff]
    %v341 = vld [vmem:[#allocation8 + $0x3d0] sm:$0xff]
    %v342 = vld [vmem:[#allocation8 + $0x3d8] sm:$0xff]
    %v343 = vld [vmem:[#allocation8 + $0x3e0] sm:$0xff]
    %v344 = vld [vmem:[#allocation8 + $0x3e8] sm:$0xff]
    %v345 = vld [vmem:[#allocation8 + $0x3f0] sm:$0xff]
    %v346 = vld [vmem:[#allocation8 + $0x3f8] sm:$0xff]
    %v347 = vld [vmem:[#allocation10] sm:$0xf]
    %v349 = vperm.slane %v347, 0
    %v350 = vperm.slane %v347, 1
    %v351 = vperm.slane %v347, 2
    %v352 = vperm.slane %v347, 3
    %v485 = vunpack.c.l.b16 %v219
    %v486 = vunpack.c.h.b16 %v219
    %v487 = vunpack.c.l.b16 %v220
    %v488 = vunpack.c.h.b16 %v220
    %v489 = vunpack.c.l.b16 %v221
    %v490 = vunpack.c.h.b16 %v221
    %v491 = vunpack.c.l.b16 %v222
    %v492 = vunpack.c.h.b16 %v222
    %v493 = vunpack.c.l.b16 %v223
    %v494 = vunpack.c.h.b16 %v223
    %v495 = vunpack.c.l.b16 %v224
    %v496 = vunpack.c.h.b16 %v224
    %v497 = vunpack.c.l.b16 %v225
    %v498 = vunpack.c.h.b16 %v225
    %v499 = vunpack.c.l.b16 %v226
    %v500 = vunpack.c.h.b16 %v226
    %v501 = vunpack.c.l.b16 %v227
    %v502 = vunpack.c.h.b16 %v227
    %v503 = vunpack.c.l.b16 %v228
    %v504 = vunpack.c.h.b16 %v228
    %v505 = vunpack.c.l.b16 %v229
    %v506 = vunpack.c.h.b16 %v229
    %v507 = vunpack.c.l.b16 %v230
    %v508 = vunpack.c.h.b16 %v230
    %v509 = vunpack.c.l.b16 %v231
    %v510 = vunpack.c.h.b16 %v231
    %v511 = vunpack.c.l.b16 %v232
    %v512 = vunpack.c.h.b16 %v232
    %v513 = vunpack.c.l.b16 %v233
    %v514 = vunpack.c.h.b16 %v233
    %v515 = vunpack.c.l.b16 %v234
    %v516 = vunpack.c.h.b16 %v234
    %v517 = vunpack.c.l.b16 %v235
    %v518 = vunpack.c.h.b16 %v235
    %v519 = vunpack.c.l.b16 %v236
    %v520 = vunpack.c.h.b16 %v236
    %v521 = vunpack.c.l.b16 %v237
    %v522 = vunpack.c.h.b16 %v237
    %v523 = vunpack.c.l.b16 %v238
    %v524 = vunpack.c.h.b16 %v238
    %v525 = vunpack.c.l.b16 %v239
    %v526 = vunpack.c.h.b16 %v239
    %v527 = vunpack.c.l.b16 %v240
    %v528 = vunpack.c.h.b16 %v240
    %v529 = vunpack.c.l.b16 %v241
    %v530 = vunpack.c.h.b16 %v241
    %v531 = vunpack.c.l.b16 %v242
    %v532 = vunpack.c.h.b16 %v242
    %v533 = vunpack.c.l.b16 %v243
    %v534 = vunpack.c.h.b16 %v243
    %v535 = vunpack.c.l.b16 %v244
    %v536 = vunpack.c.h.b16 %v244
    %v537 = vunpack.c.l.b16 %v245
    %v538 = vunpack.c.h.b16 %v245
    %v539 = vunpack.c.l.b16 %v246
    %v540 = vunpack.c.h.b16 %v246
    %v541 = vunpack.c.l.b16 %v247
    %v542 = vunpack.c.h.b16 %v247
    %v543 = vunpack.c.l.b16 %v248
    %v544 = vunpack.c.h.b16 %v248
    %v545 = vunpack.c.l.b16 %v249
    %v546 = vunpack.c.h.b16 %v249
    %v547 = vunpack.c.l.b16 %v250
    %v548 = vunpack.c.h.b16 %v250
    %v549 = vunpack.c.l.b16 %v251
    %v550 = vunpack.c.h.b16 %v251
    %v551 = vunpack.c.l.b16 %v252
    %v552 = vunpack.c.h.b16 %v252
    %v553 = vunpack.c.l.b16 %v253
    %v554 = vunpack.c.h.b16 %v253
    %v555 = vunpack.c.l.b16 %v254
    %v556 = vunpack.c.h.b16 %v254
    %v557 = vunpack.c.l.b16 %v255
    %v558 = vunpack.c.h.b16 %v255
    %v559 = vunpack.c.l.b16 %v256
    %v560 = vunpack.c.h.b16 %v256
    %v561 = vunpack.c.l.b16 %v257
    %v562 = vunpack.c.h.b16 %v257
    %v563 = vunpack.c.l.b16 %v258
    %v564 = vunpack.c.h.b16 %v258
    %v565 = vunpack.c.l.b16 %v259
    %v566 = vunpack.c.h.b16 %v259
    %v567 = vunpack.c.l.b16 %v260
    %v568 = vunpack.c.h.b16 %v260
    %v569 = vunpack.c.l.b16 %v261
    %v570 = vunpack.c.h.b16 %v261
    %v571 = vunpack.c.l.b16 %v262
    %v572 = vunpack.c.h.b16 %v262
    %v573 = vunpack.c.l.b16 %v263
    %v574 = vunpack.c.h.b16 %v263
    %v575 = vunpack.c.l.b16 %v264
    %v576 = vunpack.c.h.b16 %v264
    %v577 = vunpack.c.l.b16 %v265
    %v578 = vunpack.c.h.b16 %v265
    %v579 = vunpack.c.l.b16 %v266
    %v580 = vunpack.c.h.b16 %v266
    %v581 = vunpack.c.l.b16 %v267
    %v582 = vunpack.c.h.b16 %v267
    %v583 = vunpack.c.l.b16 %v268
    %v584 = vunpack.c.h.b16 %v268
    %v585 = vunpack.c.l.b16 %v269
    %v586 = vunpack.c.h.b16 %v269
    %v587 = vunpack.c.l.b16 %v270
    %v588 = vunpack.c.h.b16 %v270
    %v589 = vunpack.c.l.b16 %v271
    %v590 = vunpack.c.h.b16 %v271
    %v591 = vunpack.c.l.b16 %v272
    %v592 = vunpack.c.h.b16 %v272
    %v593 = vunpack.c.l.b16 %v273
    %v594 = vunpack.c.h.b16 %v273
    %v595 = vunpack.c.l.b16 %v274
    %v596 = vunpack.c.h.b16 %v274
    %v597 = vunpack.c.l.b16 %v275
    %v598 = vunpack.c.h.b16 %v275
    %v599 = vunpack.c.l.b16 %v276
    %v600 = vunpack.c.h.b16 %v276
    %v601 = vunpack.c.l.b16 %v277
    %v602 = vunpack.c.h.b16 %v277
    %v603 = vunpack.c.l.b16 %v278
    %v604 = vunpack.c.h.b16 %v278
    %v605 = vunpack.c.l.b16 %v279
    %v606 = vunpack.c.h.b16 %v279
    %v607 = vunpack.c.l.b16 %v280
    %v608 = vunpack.c.h.b16 %v280
    %v609 = vunpack.c.l.b16 %v281
    %v610 = vunpack.c.h.b16 %v281
    %v611 = vunpack.c.l.b16 %v282
    %v612 = vunpack.c.h.b16 %v282
    %v613 = vunpack.c.l.b16 %v283
    %v614 = vunpack.c.h.b16 %v283
    %v615 = vunpack.c.l.b16 %v284
    %v616 = vunpack.c.h.b16 %v284
    %v617 = vunpack.c.l.b16 %v285
    %v618 = vunpack.c.h.b16 %v285
    %v619 = vunpack.c.l.b16 %v286
    %v620 = vunpack.c.h.b16 %v286
    %v621 = vunpack.c.l.b16 %v287
    %v622 = vunpack.c.h.b16 %v287
    %v623 = vunpack.c.l.b16 %v288
    %v624 = vunpack.c.h.b16 %v288
    %v625 = vunpack.c.l.b16 %v289
    %v626 = vunpack.c.h.b16 %v289
    %v627 = vunpack.c.l.b16 %v290
    %v628 = vunpack.c.h.b16 %v290
    %v629 = vunpack.c.l.b16 %v291
    %v630 = vunpack.c.h.b16 %v291
    %v631 = vunpack.c.l.b16 %v292
    %v632 = vunpack.c.h.b16 %v292
    %v633 = vunpack.c.l.b16 %v293
    %v634 = vunpack.c.h.b16 %v293
    %v635 = vunpack.c.l.b16 %v294
    %v636 = vunpack.c.h.b16 %v294
    %v637 = vunpack.c.l.b16 %v295
    %v638 = vunpack.c.h.b16 %v295
    %v639 = vunpack.c.l.b16 %v296
    %v640 = vunpack.c.h.b16 %v296
    %v641 = vunpack.c.l.b16 %v297
    %v642 = vunpack.c.h.b16 %v297
    %v643 = vunpack.c.l.b16 %v298
    %v644 = vunpack.c.h.b16 %v298
    %v645 = vunpack.c.l.b16 %v299
    %v646 = vunpack.c.h.b16 %v299
    %v647 = vunpack.c.l.b16 %v300
    %v648 = vunpack.c.h.b16 %v300
    %v649 = vunpack.c.l.b16 %v301
    %v650 = vunpack.c.h.b16 %v301
    %v651 = vunpack.c.l.b16 %v302
    %v652 = vunpack.c.h.b16 %v302
    %v653 = vunpack.c.l.b16 %v303
    %v654 = vunpack.c.h.b16 %v303
    %v655 = vunpack.c.l.b16 %v304
    %v656 = vunpack.c.h.b16 %v304
    %v657 = vunpack.c.l.b16 %v305
    %v658 = vunpack.c.h.b16 %v305
    %v659 = vunpack.c.l.b16 %v306
    %v660 = vunpack.c.h.b16 %v306
    %v661 = vunpack.c.l.b16 %v307
    %v662 = vunpack.c.h.b16 %v307
    %v663 = vunpack.c.l.b16 %v308
    %v664 = vunpack.c.h.b16 %v308
    %v665 = vunpack.c.l.b16 %v309
    %v666 = vunpack.c.h.b16 %v309
    %v667 = vunpack.c.l.b16 %v310
    %v668 = vunpack.c.h.b16 %v310
    %v669 = vunpack.c.l.b16 %v311
    %v670 = vunpack.c.h.b16 %v311
    %v671 = vunpack.c.l.b16 %v312
    %v672 = vunpack.c.h.b16 %v312
    %v673 = vunpack.c.l.b16 %v313
    %v674 = vunpack.c.h.b16 %v313
    %v675 = vunpack.c.l.b16 %v314
    %v676 = vunpack.c.h.b16 %v314
    %v677 = vunpack.c.l.b16 %v315
    %v678 = vunpack.c.h.b16 %v315
    %v679 = vunpack.c.l.b16 %v316
    %v680 = vunpack.c.h.b16 %v316
    %v681 = vunpack.c.l.b16 %v317
    %v682 = vunpack.c.h.b16 %v317
    %v683 = vunpack.c.l.b16 %v318
    %v684 = vunpack.c.h.b16 %v318
    %v685 = vunpack.c.l.b16 %v319
    %v686 = vunpack.c.h.b16 %v319
    %v687 = vunpack.c.l.b16 %v320
    %v688 = vunpack.c.h.b16 %v320
    %v689 = vunpack.c.l.b16 %v321
    %v690 = vunpack.c.h.b16 %v321
    %v691 = vunpack.c.l.b16 %v322
    %v692 = vunpack.c.h.b16 %v322
    %v693 = vunpack.c.l.b16 %v323
    %v694 = vunpack.c.h.b16 %v323
    %v695 = vunpack.c.l.b16 %v324
    %v696 = vunpack.c.h.b16 %v324
    %v697 = vunpack.c.l.b16 %v325
    %v698 = vunpack.c.h.b16 %v325
    %v699 = vunpack.c.l.b16 %v326
    %v700 = vunpack.c.h.b16 %v326
    %v701 = vunpack.c.l.b16 %v327
    %v702 = vunpack.c.h.b16 %v327
    %v703 = vunpack.c.l.b16 %v328
    %v704 = vunpack.c.h.b16 %v328
    %v705 = vunpack.c.l.b16 %v329
    %v706 = vunpack.c.h.b16 %v329
    %v707 = vunpack.c.l.b16 %v330
    %v708 = vunpack.c.h.b16 %v330
    %v709 = vunpack.c.l.b16 %v331
    %v710 = vunpack.c.h.b16 %v331
    %v711 = vunpack.c.l.b16 %v332
    %v712 = vunpack.c.h.b16 %v332
    %v713 = vunpack.c.l.b16 %v333
    %v714 = vunpack.c.h.b16 %v333
    %v715 = vunpack.c.l.b16 %v334
    %v716 = vunpack.c.h.b16 %v334
    %v717 = vunpack.c.l.b16 %v335
    %v718 = vunpack.c.h.b16 %v335
    %v719 = vunpack.c.l.b16 %v336
    %v720 = vunpack.c.h.b16 %v336
    %v721 = vunpack.c.l.b16 %v337
    %v722 = vunpack.c.h.b16 %v337
    %v723 = vunpack.c.l.b16 %v338
    %v724 = vunpack.c.h.b16 %v338
    %v725 = vunpack.c.l.b16 %v339
    %v726 = vunpack.c.h.b16 %v339
    %v727 = vunpack.c.l.b16 %v340
    %v728 = vunpack.c.h.b16 %v340
    %v729 = vunpack.c.l.b16 %v341
    %v730 = vunpack.c.h.b16 %v341
    %v731 = vunpack.c.l.b16 %v342
    %v732 = vunpack.c.h.b16 %v342
    %v733 = vunpack.c.l.b16 %v343
    %v734 = vunpack.c.h.b16 %v343
    %v735 = vunpack.c.l.b16 %v344
    %v736 = vunpack.c.h.b16 %v344
    %v737 = vunpack.c.l.b16 %v345
    %v738 = vunpack.c.h.b16 %v345
    %v739 = vunpack.c.l.b16 %v346
    %v740 = vunpack.c.h.b16 %v346
    %v741 = vpack.c.b16 %v489, %v485
    %v742 = vpack.c.b16 %v490, %v486
    %v743 = vpack.c.b16 %v491, %v487
    %v744 = vpack.c.b16 %v492, %v488
    %v745 = vpack.c.b16 %v497, %v493
    %v746 = vpack.c.b16 %v498, %v494
    %v747 = vpack.c.b16 %v499, %v495
    %v748 = vpack.c.b16 %v500, %v496
    %v749 = vpack.c.b16 %v505, %v501
    %v750 = vpack.c.b16 %v506, %v502
    %v751 = vpack.c.b16 %v507, %v503
    %v752 = vpack.c.b16 %v508, %v504
    %v753 = vpack.c.b16 %v513, %v509
    %v754 = vpack.c.b16 %v514, %v510
    %v755 = vpack.c.b16 %v515, %v511
    %v756 = vpack.c.b16 %v516, %v512
    %v757 = vpack.c.b16 %v521, %v517
    %v758 = vpack.c.b16 %v522, %v518
    %v759 = vpack.c.b16 %v523, %v519
    %v760 = vpack.c.b16 %v524, %v520
    %v761 = vpack.c.b16 %v529, %v525
    %v762 = vpack.c.b16 %v530, %v526
    %v763 = vpack.c.b16 %v531, %v527
    %v764 = vpack.c.b16 %v532, %v528
    %v765 = vpack.c.b16 %v537, %v533
    %v766 = vpack.c.b16 %v538, %v534
    %v767 = vpack.c.b16 %v539, %v535
    %v768 = vpack.c.b16 %v540, %v536
    %v769 = vpack.c.b16 %v545, %v541
    %v770 = vpack.c.b16 %v546, %v542
    %v771 = vpack.c.b16 %v547, %v543
    %v772 = vpack.c.b16 %v548, %v544
    %v773 = vpack.c.b16 %v553, %v549
    %v774 = vpack.c.b16 %v554, %v550
    %v775 = vpack.c.b16 %v555, %v551
    %v776 = vpack.c.b16 %v556, %v552
    %v777 = vpack.c.b16 %v561, %v557
    %v778 = vpack.c.b16 %v562, %v558
    %v779 = vpack.c.b16 %v563, %v559
    %v780 = vpack.c.b16 %v564, %v560
    %v781 = vpack.c.b16 %v569, %v565
    %v782 = vpack.c.b16 %v570, %v566
    %v783 = vpack.c.b16 %v571, %v567
    %v784 = vpack.c.b16 %v572, %v568
    %v785 = vpack.c.b16 %v577, %v573
    %v786 = vpack.c.b16 %v578, %v574
    %v787 = vpack.c.b16 %v579, %v575
    %v788 = vpack.c.b16 %v580, %v576
    %v789 = vpack.c.b16 %v585, %v581
    %v790 = vpack.c.b16 %v586, %v582
    %v791 = vpack.c.b16 %v587, %v583
    %v792 = vpack.c.b16 %v588, %v584
    %v793 = vpack.c.b16 %v593, %v589
    %v794 = vpack.c.b16 %v594, %v590
    %v795 = vpack.c.b16 %v595, %v591
    %v796 = vpack.c.b16 %v596, %v592
    %v797 = vpack.c.b16 %v601, %v597
    %v798 = vpack.c.b16 %v602, %v598
    %v799 = vpack.c.b16 %v603, %v599
    %v800 = vpack.c.b16 %v604, %v600
    %v801 = vpack.c.b16 %v609, %v605
    %v802 = vpack.c.b16 %v610, %v606
    %v803 = vpack.c.b16 %v611, %v607
    %v804 = vpack.c.b16 %v612, %v608
    %v805 = vpack.c.b16 %v617, %v613
    %v806 = vpack.c.b16 %v618, %v614
    %v807 = vpack.c.b16 %v619, %v615
    %v808 = vpack.c.b16 %v620, %v616
    %v809 = vpack.c.b16 %v625, %v621
    %v810 = vpack.c.b16 %v626, %v622
    %v811 = vpack.c.b16 %v627, %v623
    %v812 = vpack.c.b16 %v628, %v624
    %v813 = vpack.c.b16 %v633, %v629
    %v814 = vpack.c.b16 %v634, %v630
    %v815 = vpack.c.b16 %v635, %v631
    %v816 = vpack.c.b16 %v636, %v632
    %v817 = vpack.c.b16 %v641, %v637
    %v818 = vpack.c.b16 %v642, %v638
    %v819 = vpack.c.b16 %v643, %v639
    %v820 = vpack.c.b16 %v644, %v640
    %v821 = vpack.c.b16 %v649, %v645
    %v822 = vpack.c.b16 %v650, %v646
    %v823 = vpack.c.b16 %v651, %v647
    %v824 = vpack.c.b16 %v652, %v648
    %v825 = vpack.c.b16 %v657, %v653
    %v826 = vpack.c.b16 %v658, %v654
    %v827 = vpack.c.b16 %v659, %v655
    %v828 = vpack.c.b16 %v660, %v656
    %v829 = vpack.c.b16 %v665, %v661
    %v830 = vpack.c.b16 %v666, %v662
    %v831 = vpack.c.b16 %v667, %v663
    %v832 = vpack.c.b16 %v668, %v664
    %v833 = vpack.c.b16 %v673, %v669
    %v834 = vpack.c.b16 %v674, %v670
    %v835 = vpack.c.b16 %v675, %v671
    %v836 = vpack.c.b16 %v676, %v672
    %v837 = vpack.c.b16 %v681, %v677
    %v838 = vpack.c.b16 %v682, %v678
    %v839 = vpack.c.b16 %v683, %v679
    %v840 = vpack.c.b16 %v684, %v680
    %v841 = vpack.c.b16 %v689, %v685
    %v842 = vpack.c.b16 %v690, %v686
    %v843 = vpack.c.b16 %v691, %v687
    %v844 = vpack.c.b16 %v692, %v688
    %v845 = vpack.c.b16 %v697, %v693
    %v846 = vpack.c.b16 %v698, %v694
    %v847 = vpack.c.b16 %v699, %v695
    %v848 = vpack.c.b16 %v700, %v696
    %v849 = vpack.c.b16 %v705, %v701
    %v850 = vpack.c.b16 %v706, %v702
    %v851 = vpack.c.b16 %v707, %v703
    %v852 = vpack.c.b16 %v708, %v704
    %v853 = vpack.c.b16 %v713, %v709
    %v854 = vpack.c.b16 %v714, %v710
    %v855 = vpack.c.b16 %v715, %v711
    %v856 = vpack.c.b16 %v716, %v712
    %v857 = vpack.c.b16 %v721, %v717
    %v858 = vpack.c.b16 %v722, %v718
    %v859 = vpack.c.b16 %v723, %v719
    %v860 = vpack.c.b16 %v724, %v720
    %v861 = vpack.c.b16 %v729, %v725
    %v862 = vpack.c.b16 %v730, %v726
    %v863 = vpack.c.b16 %v731, %v727
    %v864 = vpack.c.b16 %v732, %v728
    %v865 = vpack.c.b16 %v737, %v733
    %v866 = vpack.c.b16 %v738, %v734
    %v867 = vpack.c.b16 %v739, %v735
    %v868 = vpack.c.b16 %v740, %v736
    %997 = vmatpush.bf16.msra.mxu0 %v769
    %998 = vmatpush.bf16.msra.mxu0 %v765
    %999 = vmatpush.bf16.msra.mxu0 %v761
    %1000 = vmatpush.bf16.msra.mxu0 %v757
    %1001 = vmatpush.bf16.msra.mxu0 %v753
    %1002 = vmatpush.bf16.msra.mxu0 %v749
    %1003 = vmatpush.bf16.msra.mxu0 %v745
    %1004 = vmatpush.bf16.msra.mxu0 %v741
    %1005 = vmatmul.bf16.gmra.mxu0 %v215
    %v1006 = vpop.f32.mrf.mxu0
    %v1007 = vadd.f32 %v349, %v1006
    %v1008 = vpop.f32.mrf.mxu0
    %1009 = vdwg.mxu0
    %1010 = vmatpush.bf16.msra.mxu0 %v801
    %1011 = vmatpush.bf16.msra.mxu0 %v797
    %1012 = vmatpush.bf16.msra.mxu0 %v793
    %1013 = vmatpush.bf16.msra.mxu0 %v789
    %1014 = vmatpush.bf16.msra.mxu0 %v785
    %1015 = vmatpush.bf16.msra.mxu0 %v781
    %1016 = vmatpush.bf16.msra.mxu0 %v777
    %1017 = vmatpush.bf16.msra.mxu0 %v773
    %1018 = vmatmul.bf16.gmra.mxu0 %v216
    %v1019 = vpop.f32.mrf.mxu0
    %v1020 = vadd.f32 %v1007, %v1019
    %v1021 = vpop.f32.mrf.mxu0
    %1022 = vdwg.mxu0
    %1023 = vmatpush.bf16.msra.mxu0 %v833
    %1024 = vmatpush.bf16.msra.mxu0 %v829
    %1025 = vmatpush.bf16.msra.mxu0 %v825
    %1026 = vmatpush.bf16.msra.mxu0 %v821
    %1027 = vmatpush.bf16.msra.mxu0 %v817
    %1028 = vmatpush.bf16.msra.mxu0 %v813
    %1029 = vmatpush.bf16.msra.mxu0 %v809
    %1030 = vmatpush.bf16.msra.mxu0 %v805
    %1031 = vmatmul.bf16.gmra.mxu0 %v217
    %v1032 = vpop.f32.mrf.mxu0
    %v1033 = vadd.f32 %v1020, %v1032
    %v1034 = vpop.f32.mrf.mxu0
    %1035 = vdwg.mxu0
    %1036 = vmatpush.bf16.msra.mxu0 %v865
    %1037 = vmatpush.bf16.msra.mxu0 %v861
    %1038 = vmatpush.bf16.msra.mxu0 %v857
    %1039 = vmatpush.bf16.msra.mxu0 %v853
    %1040 = vmatpush.bf16.msra.mxu0 %v849
    %1041 = vmatpush.bf16.msra.mxu0 %v845
    %1042 = vmatpush.bf16.msra.mxu0 %v841
    %1043 = vmatpush.bf16.msra.mxu0 %v837
    %1044 = vmatmul.bf16.gmra.mxu0 %v218
    %v1045 = vpop.f32.mrf.mxu0
    %v1046 = vadd.f32 %v1033, %v1045
    %v1047 = vpop.f32.mrf.mxu0
    %1048 = vdwg.mxu0
    %1049 = vmatpush.bf16.msra.mxu0 %v770
    %1050 = vmatpush.bf16.msra.mxu0 %v766
    %1051 = vmatpush.bf16.msra.mxu0 %v762
    %1052 = vmatpush.bf16.msra.mxu0 %v758
    %1053 = vmatpush.bf16.msra.mxu0 %v754
    %1054 = vmatpush.bf16.msra.mxu0 %v750
    %1055 = vmatpush.bf16.msra.mxu0 %v746
    %1056 = vmatpush.bf16.msra.mxu0 %v742
    %1057 = vmatmul.bf16.gmra.mxu0 %v215
    %v1058 = vpop.f32.mrf.mxu0
    %v1059 = vadd.f32 %v350, %v1058
    %v1060 = vpop.f32.mrf.mxu0
    %1061 = vdwg.mxu0
    %1062 = vmatpush.bf16.msra.mxu0 %v802
    %1063 = vmatpush.bf16.msra.mxu0 %v798
    %1064 = vmatpush.bf16.msra.mxu0 %v794
    %1065 = vmatpush.bf16.msra.mxu0 %v790
    %1066 = vmatpush.bf16.msra.mxu0 %v786
    %1067 = vmatpush.bf16.msra.mxu0 %v782
    %1068 = vmatpush.bf16.msra.mxu0 %v778
    %1069 = vmatpush.bf16.msra.mxu0 %v774
    %1070 = vmatmul.bf16.gmra.mxu0 %v216
    %v1071 = vpop.f32.mrf.mxu0
    %v1072 = vadd.f32 %v1059, %v1071
    %v1073 = vpop.f32.mrf.mxu0
    %1074 = vdwg.mxu0
    %1075 = vmatpush.bf16.msra.mxu0 %v834
    %1076 = vmatpush.bf16.msra.mxu0 %v830
    %1077 = vmatpush.bf16.msra.mxu0 %v826
    %1078 = vmatpush.bf16.msra.mxu0 %v822
    %1079 = vmatpush.bf16.msra.mxu0 %v818
    %1080 = vmatpush.bf16.msra.mxu0 %v814
    %1081 = vmatpush.bf16.msra.mxu0 %v810
    %1082 = vmatpush.bf16.msra.mxu0 %v806
    %1083 = vmatmul.bf16.gmra.mxu0 %v217
    %v1084 = vpop.f32.mrf.mxu0
    %v1085 = vadd.f32 %v1072, %v1084
    %v1086 = vpop.f32.mrf.mxu0
    %1087 = vdwg.mxu0
    %1088 = vmatpush.bf16.msra.mxu0 %v866
    %1089 = vmatpush.bf16.msra.mxu0 %v862
    %1090 = vmatpush.bf16.msra.mxu0 %v858
    %1091 = vmatpush.bf16.msra.mxu0 %v854
    %1092 = vmatpush.bf16.msra.mxu0 %v850
    %1093 = vmatpush.bf16.msra.mxu0 %v846
    %1094 = vmatpush.bf16.msra.mxu0 %v842
    %1095 = vmatpush.bf16.msra.mxu0 %v838
    %1096 = vmatmul.bf16.gmra.mxu0 %v218
    %v1097 = vpop.f32.mrf.mxu0
    %v1098 = vadd.f32 %v1085, %v1097
    %v1099 = vpop.f32.mrf.mxu0
    %1100 = vdwg.mxu0
    %1101 = vmatpush.bf16.msra.mxu0 %v771
    %1102 = vmatpush.bf16.msra.mxu0 %v767
    %1103 = vmatpush.bf16.msra.mxu0 %v763
    %1104 = vmatpush.bf16.msra.mxu0 %v759
    %1105 = vmatpush.bf16.msra.mxu0 %v755
    %1106 = vmatpush.bf16.msra.mxu0 %v751
    %1107 = vmatpush.bf16.msra.mxu0 %v747
    %1108 = vmatpush.bf16.msra.mxu0 %v743
    %1109 = vmatmul.bf16.gmra.mxu0 %v215
    %v1110 = vpop.f32.mrf.mxu0
    %v1111 = vadd.f32 %v351, %v1110
    %v1112 = vpop.f32.mrf.mxu0
    %1113 = vdwg.mxu0
    %1114 = vmatpush.bf16.msra.mxu0 %v803
    %1115 = vmatpush.bf16.msra.mxu0 %v799
    %1116 = vmatpush.bf16.msra.mxu0 %v795
    %1117 = vmatpush.bf16.msra.mxu0 %v791
    %1118 = vmatpush.bf16.msra.mxu0 %v787
    %1119 = vmatpush.bf16.msra.mxu0 %v783
    %1120 = vmatpush.bf16.msra.mxu0 %v779
    %1121 = vmatpush.bf16.msra.mxu0 %v775
    %1122 = vmatmul.bf16.gmra.mxu0 %v216
    %v1123 = vpop.f32.mrf.mxu0
    %v1124 = vadd.f32 %v1111, %v1123
    %v1125 = vpop.f32.mrf.mxu0
    %1126 = vdwg.mxu0
    %1127 = vmatpush.bf16.msra.mxu0 %v835
    %1128 = vmatpush.bf16.msra.mxu0 %v831
    %1129 = vmatpush.bf16.msra.mxu0 %v827
    %1130 = vmatpush.bf16.msra.mxu0 %v823
    %1131 = vmatpush.bf16.msra.mxu0 %v819
    %1132 = vmatpush.bf16.msra.mxu0 %v815
    %1133 = vmatpush.bf16.msra.mxu0 %v811
    %1134 = vmatpush.bf16.msra.mxu0 %v807
    %1135 = vmatmul.bf16.gmra.mxu0 %v217
    %v1136 = vpop.f32.mrf.mxu0
    %v1137 = vadd.f32 %v1124, %v1136
    %v1138 = vpop.f32.mrf.mxu0
    %1139 = vdwg.mxu0
    %1140 = vmatpush.bf16.msra.mxu0 %v867
    %1141 = vmatpush.bf16.msra.mxu0 %v863
    %1142 = vmatpush.bf16.msra.mxu0 %v859
    %1143 = vmatpush.bf16.msra.mxu0 %v855
    %1144 = vmatpush.bf16.msra.mxu0 %v851
    %1145 = vmatpush.bf16.msra.mxu0 %v847
    %1146 = vmatpush.bf16.msra.mxu0 %v843
    %1147 = vmatpush.bf16.msra.mxu0 %v839
    %1148 = vmatmul.bf16.gmra.mxu0 %v218
    %v1149 = vpop.f32.mrf.mxu0
    %v1150 = vadd.f32 %v1137, %v1149
    %v1151 = vpop.f32.mrf.mxu0
    %1152 = vdwg.mxu0
    %1153 = vmatpush.bf16.msra.mxu0 %v772
    %1154 = vmatpush.bf16.msra.mxu0 %v768
    %1155 = vmatpush.bf16.msra.mxu0 %v764
    %1156 = vmatpush.bf16.msra.mxu0 %v760
    %1157 = vmatpush.bf16.msra.mxu0 %v756
    %1158 = vmatpush.bf16.msra.mxu0 %v752
    %1159 = vmatpush.bf16.msra.mxu0 %v748
    %1160 = vmatpush.bf16.msra.mxu0 %v744
    %1161 = vmatmul.bf16.gmra.mxu0 %v215
    %v1162 = vpop.f32.mrf.mxu0
    %v1163 = vadd.f32 %v352, %v1162
    %v1164 = vpop.f32.mrf.mxu0
    %1165 = vdwg.mxu0
    %1166 = vmatpush.bf16.msra.mxu0 %v804
    %1167 = vmatpush.bf16.msra.mxu0 %v800
    %1168 = vmatpush.bf16.msra.mxu0 %v796
    %1169 = vmatpush.bf16.msra.mxu0 %v792
    %1170 = vmatpush.bf16.msra.mxu0 %v788
    %1171 = vmatpush.bf16.msra.mxu0 %v784
    %1172 = vmatpush.bf16.msra.mxu0 %v780
    %1173 = vmatpush.bf16.msra.mxu0 %v776
    %1174 = vmatmul.bf16.gmra.mxu0 %v216
    %v1175 = vpop.f32.mrf.mxu0
    %v1176 = vadd.f32 %v1163, %v1175
    %v1177 = vpop.f32.mrf.mxu0
    %1178 = vdwg.mxu0
    %1179 = vmatpush.bf16.msra.mxu0 %v836
    %1180 = vmatpush.bf16.msra.mxu0 %v832
    %1181 = vmatpush.bf16.msra.mxu0 %v828
    %1182 = vmatpush.bf16.msra.mxu0 %v824
    %1183 = vmatpush.bf16.msra.mxu0 %v820
    %1184 = vmatpush.bf16.msra.mxu0 %v816
    %1185 = vmatpush.bf16.msra.mxu0 %v812
    %1186 = vmatpush.bf16.msra.mxu0 %v808
    %1187 = vmatmul.bf16.gmra.mxu0 %v217
    %v1188 = vpop.f32.mrf.mxu0
    %v1189 = vadd.f32 %v1176, %v1188
    %v1190 = vpop.f32.mrf.mxu0
    %1191 = vdwg.mxu0
    %1192 = vmatpush.bf16.msra.mxu0 %v868
    %1193 = vmatpush.bf16.msra.mxu0 %v864
    %1194 = vmatpush.bf16.msra.mxu0 %v860
    %1195 = vmatpush.bf16.msra.mxu0 %v856
    %1196 = vmatpush.bf16.msra.mxu0 %v852
    %1197 = vmatpush.bf16.msra.mxu0 %v848
    %1198 = vmatpush.bf16.msra.mxu0 %v844
    %1199 = vmatpush.bf16.msra.mxu0 %v840
    %1200 = vmatmul.bf16.gmra.mxu0 %v218
    %v1201 = vpop.f32.mrf.mxu0
    %v1202 = vadd.f32 %v1189, %v1201
    %v1203 = vpop.f32.mrf.mxu0
    %1204 = vdwg.mxu0
    %v1205 = vmul.f32 %v1046, 0.1
    %v1206 = vmul.f32 %v1098, 0.1
    %v1207 = vmul.f32 %v1150, 0.1
    %v1208 = vmul.f32 %v1202, 0.1
    %v1209 = vmax.f32 %v1046, %v1205
    %v1210 = vmax.f32 %v1098, %v1206
    %v1211 = vmax.f32 %v1150, %v1207
    %v1212 = vmax.f32 %v1202, %v1208
    %v1213 = vpack.c.bf16 %v1209, %v1209
    %v1214 = vpack.c.bf16 %v1210, %v1210
    %v1215 = vpack.c.bf16 %v1211, %v1211
    %v1216 = vpack.c.bf16 %v1212, %v1212
    %v1217 = vld [vmem:[#allocation11] sm:$0xf]
    %v1218 = vld [vmem:[#allocation11 + $0x4] sm:$0xf]
    %v1219 = vld [vmem:[#allocation11 + $0x8] sm:$0xf]
    %v1220 = vld [vmem:[#allocation11 + $0xc] sm:$0xf]
    %v1221 = vld [vmem:[#allocation11 + $0x10] sm:$0xf]
    %v1222 = vld [vmem:[#allocation11 + $0x14] sm:$0xf]
    %v1223 = vld [vmem:[#allocation11 + $0x18] sm:$0xf]
    %v1224 = vld [vmem:[#allocation11 + $0x1c] sm:$0xf]
    %v1225 = vld [vmem:[#allocation11 + $0x20] sm:$0xf]
    %v1226 = vld [vmem:[#allocation11 + $0x24] sm:$0xf]
    %v1227 = vld [vmem:[#allocation11 + $0x28] sm:$0xf]
    %v1228 = vld [vmem:[#allocation11 + $0x2c] sm:$0xf]
    %v1229 = vld [vmem:[#allocation11 + $0x30] sm:$0xf]
    %v1230 = vld [vmem:[#allocation11 + $0x34] sm:$0xf]
    %v1231 = vld [vmem:[#allocation11 + $0x38] sm:$0xf]
    %v1232 = vld [vmem:[#allocation11 + $0x3c] sm:$0xf]
    %v1233 = vld [vmem:[#allocation11 + $0x40] sm:$0xf]
    %v1234 = vld [vmem:[#allocation11 + $0x44] sm:$0xf]
    %v1235 = vld [vmem:[#allocation11 + $0x48] sm:$0xf]
    %v1236 = vld [vmem:[#allocation11 + $0x4c] sm:$0xf]
    %v1237 = vld [vmem:[#allocation11 + $0x50] sm:$0xf]
    %v1238 = vld [vmem:[#allocation11 + $0x54] sm:$0xf]
    %v1239 = vld [vmem:[#allocation11 + $0x58] sm:$0xf]
    %v1240 = vld [vmem:[#allocation11 + $0x5c] sm:$0xf]
    %v1241 = vld [vmem:[#allocation11 + $0x60] sm:$0xf]
    %v1242 = vld [vmem:[#allocation11 + $0x64] sm:$0xf]
    %v1243 = vld [vmem:[#allocation11 + $0x68] sm:$0xf]
    %v1244 = vld [vmem:[#allocation11 + $0x6c] sm:$0xf]
    %v1245 = vld [vmem:[#allocation11 + $0x70] sm:$0xf]
    %v1246 = vld [vmem:[#allocation11 + $0x74] sm:$0xf]
    %v1247 = vld [vmem:[#allocation11 + $0x78] sm:$0xf]
    %v1248 = vld [vmem:[#allocation11 + $0x7c] sm:$0xf]
    %v1249 = vld [vmem:[#allocation11 + $0x80] sm:$0xf]
    %v1250 = vld [vmem:[#allocation11 + $0x84] sm:$0xf]
    %v1251 = vld [vmem:[#allocation11 + $0x88] sm:$0xf]
    %v1252 = vld [vmem:[#allocation11 + $0x8c] sm:$0xf]
    %v1253 = vld [vmem:[#allocation11 + $0x90] sm:$0xf]
    %v1254 = vld [vmem:[#allocation11 + $0x94] sm:$0xf]
    %v1255 = vld [vmem:[#allocation11 + $0x98] sm:$0xf]
    %v1256 = vld [vmem:[#allocation11 + $0x9c] sm:$0xf]
    %v1257 = vld [vmem:[#allocation11 + $0xa0] sm:$0xf]
    %v1258 = vld [vmem:[#allocation11 + $0xa4] sm:$0xf]
    %v1259 = vld [vmem:[#allocation11 + $0xa8] sm:$0xf]
    %v1260 = vld [vmem:[#allocation11 + $0xac] sm:$0xf]
    %v1261 = vld [vmem:[#allocation11 + $0xb0] sm:$0xf]
    %v1262 = vld [vmem:[#allocation11 + $0xb4] sm:$0xf]
    %v1263 = vld [vmem:[#allocation11 + $0xb8] sm:$0xf]
    %v1264 = vld [vmem:[#allocation11 + $0xbc] sm:$0xf]
    %v1265 = vld [vmem:[#allocation11 + $0xc0] sm:$0xf]
    %v1266 = vld [vmem:[#allocation11 + $0xc4] sm:$0xf]
    %v1267 = vld [vmem:[#allocation11 + $0xc8] sm:$0xf]
    %v1268 = vld [vmem:[#allocation11 + $0xcc] sm:$0xf]
    %v1269 = vld [vmem:[#allocation11 + $0xd0] sm:$0xf]
    %v1270 = vld [vmem:[#allocation11 + $0xd4] sm:$0xf]
    %v1271 = vld [vmem:[#allocation11 + $0xd8] sm:$0xf]
    %v1272 = vld [vmem:[#allocation11 + $0xdc] sm:$0xf]
    %v1273 = vld [vmem:[#allocation11 + $0xe0] sm:$0xf]
    %v1274 = vld [vmem:[#allocation11 + $0xe4] sm:$0xf]
    %v1275 = vld [vmem:[#allocation11 + $0xe8] sm:$0xf]
    %v1276 = vld [vmem:[#allocation11 + $0xec] sm:$0xf]
    %v1277 = vld [vmem:[#allocation11 + $0xf0] sm:$0xf]
    %v1278 = vld [vmem:[#allocation11 + $0xf4] sm:$0xf]
    %v1279 = vld [vmem:[#allocation11 + $0xf8] sm:$0xf]
    %v1280 = vld [vmem:[#allocation11 + $0xfc] sm:$0xf]
    %v1281 = vld [vmem:[%s6] sm:$0x1]
    %v1283 = vperm.slane %v1281, 0
    %v1349 = vunpack.c.l.b16 %v1217
    %v1350 = vunpack.c.l.b16 %v1218
    %v1351 = vunpack.c.l.b16 %v1219
    %v1352 = vunpack.c.l.b16 %v1220
    %v1353 = vunpack.c.l.b16 %v1221
    %v1354 = vunpack.c.l.b16 %v1222
    %v1355 = vunpack.c.l.b16 %v1223
    %v1356 = vunpack.c.l.b16 %v1224
    %v1357 = vunpack.c.l.b16 %v1225
    %v1358 = vunpack.c.l.b16 %v1226
    %v1359 = vunpack.c.l.b16 %v1227
    %v1360 = vunpack.c.l.b16 %v1228
    %v1361 = vunpack.c.l.b16 %v1229
    %v1362 = vunpack.c.l.b16 %v1230
    %v1363 = vunpack.c.l.b16 %v1231
    %v1364 = vunpack.c.l.b16 %v1232
    %v1365 = vunpack.c.l.b16 %v1233
    %v1366 = vunpack.c.l.b16 %v1234
    %v1367 = vunpack.c.l.b16 %v1235
    %v1368 = vunpack.c.l.b16 %v1236
    %v1369 = vunpack.c.l.b16 %v1237
    %v1370 = vunpack.c.l.b16 %v1238
    %v1371 = vunpack.c.l.b16 %v1239
    %v1372 = vunpack.c.l.b16 %v1240
    %v1373 = vunpack.c.l.b16 %v1241
    %v1374 = vunpack.c.l.b16 %v1242
    %v1375 = vunpack.c.l.b16 %v1243
    %v1376 = vunpack.c.l.b16 %v1244
    %v1377 = vunpack.c.l.b16 %v1245
    %v1378 = vunpack.c.l.b16 %v1246
    %v1379 = vunpack.c.l.b16 %v1247
    %v1380 = vunpack.c.l.b16 %v1248
    %v1381 = vunpack.c.l.b16 %v1249
    %v1382 = vunpack.c.l.b16 %v1250
    %v1383 = vunpack.c.l.b16 %v1251
    %v1384 = vunpack.c.l.b16 %v1252
    %v1385 = vunpack.c.l.b16 %v1253
    %v1386 = vunpack.c.l.b16 %v1254
    %v1387 = vunpack.c.l.b16 %v1255
    %v1388 = vunpack.c.l.b16 %v1256
    %v1389 = vunpack.c.l.b16 %v1257
    %v1390 = vunpack.c.l.b16 %v1258
    %v1391 = vunpack.c.l.b16 %v1259
    %v1392 = vunpack.c.l.b16 %v1260
    %v1393 = vunpack.c.l.b16 %v1261
    %v1394 = vunpack.c.l.b16 %v1262
    %v1395 = vunpack.c.l.b16 %v1263
    %v1396 = vunpack.c.l.b16 %v1264
    %v1397 = vunpack.c.l.b16 %v1265
    %v1398 = vunpack.c.l.b16 %v1266
    %v1399 = vunpack.c.l.b16 %v1267
    %v1400 = vunpack.c.l.b16 %v1268
    %v1401 = vunpack.c.l.b16 %v1269
    %v1402 = vunpack.c.l.b16 %v1270
    %v1403 = vunpack.c.l.b16 %v1271
    %v1404 = vunpack.c.l.b16 %v1272
    %v1405 = vunpack.c.l.b16 %v1273
    %v1406 = vunpack.c.l.b16 %v1274
    %v1407 = vunpack.c.l.b16 %v1275
    %v1408 = vunpack.c.l.b16 %v1276
    %v1409 = vunpack.c.l.b16 %v1277
    %v1410 = vunpack.c.l.b16 %v1278
    %v1411 = vunpack.c.l.b16 %v1279
    %v1412 = vunpack.c.l.b16 %v1280
    %v1413 = vpack.c.b16 %v1350, %v1349
    %v1414 = vpack.c.b16 %v1352, %v1351
    %v1415 = vpack.c.b16 %v1354, %v1353
    %v1416 = vpack.c.b16 %v1356, %v1355
    %v1417 = vpack.c.b16 %v1358, %v1357
    %v1418 = vpack.c.b16 %v1360, %v1359
    %v1419 = vpack.c.b16 %v1362, %v1361
    %v1420 = vpack.c.b16 %v1364, %v1363
    %v1421 = vpack.c.b16 %v1366, %v1365
    %v1422 = vpack.c.b16 %v1368, %v1367
    %v1423 = vpack.c.b16 %v1370, %v1369
    %v1424 = vpack.c.b16 %v1372, %v1371
    %v1425 = vpack.c.b16 %v1374, %v1373
    %v1426 = vpack.c.b16 %v1376, %v1375
    %v1427 = vpack.c.b16 %v1378, %v1377
    %v1428 = vpack.c.b16 %v1380, %v1379
    %v1429 = vpack.c.b16 %v1382, %v1381
    %v1430 = vpack.c.b16 %v1384, %v1383
    %v1431 = vpack.c.b16 %v1386, %v1385
    %v1432 = vpack.c.b16 %v1388, %v1387
    %v1433 = vpack.c.b16 %v1390, %v1389
    %v1434 = vpack.c.b16 %v1392, %v1391
    %v1435 = vpack.c.b16 %v1394, %v1393
    %v1436 = vpack.c.b16 %v1396, %v1395
    %v1437 = vpack.c.b16 %v1398, %v1397
    %v1438 = vpack.c.b16 %v1400, %v1399
    %v1439 = vpack.c.b16 %v1402, %v1401
    %v1440 = vpack.c.b16 %v1404, %v1403
    %v1441 = vpack.c.b16 %v1406, %v1405
    %v1442 = vpack.c.b16 %v1408, %v1407
    %v1443 = vpack.c.b16 %v1410, %v1409
    %v1444 = vpack.c.b16 %v1412, %v1411
    %1477 = vmatpush.bf16.msra.mxu0 %v1420
    %1478 = vmatpush.bf16.msra.mxu0 %v1419
    %1479 = vmatpush.bf16.msra.mxu0 %v1418
    %1480 = vmatpush.bf16.msra.mxu0 %v1417
    %1481 = vmatpush.bf16.msra.mxu0 %v1416
    %1482 = vmatpush.bf16.msra.mxu0 %v1415
    %1483 = vmatpush.bf16.msra.mxu0 %v1414
    %1484 = vmatpush.bf16.msra.mxu0 %v1413
    %1485 = vmatmul.bf16.gmra.mxu0 %v1213
    %v1486 = vpop.f32.mrf.mxu0
    %v1487 = vadd.f32 %v1283, %v1486
    %v1488 = vpop.f32.mrf.mxu0
    %1489 = vdwg.mxu0
    %1490 = vmatpush.bf16.msra.mxu0 %v1428
    %1491 = vmatpush.bf16.msra.mxu0 %v1427
    %1492 = vmatpush.bf16.msra.mxu0 %v1426
    %1493 = vmatpush.bf16.msra.mxu0 %v1425
    %1494 = vmatpush.bf16.msra.mxu0 %v1424
    %1495 = vmatpush.bf16.msra.mxu0 %v1423
    %1496 = vmatpush.bf16.msra.mxu0 %v1422
    %1497 = vmatpush.bf16.msra.mxu0 %v1421
    %1498 = vmatmul.bf16.gmra.mxu0 %v1214
    %v1499 = vpop.f32.mrf.mxu0
    %v1500 = vadd.f32 %v1487, %v1499
    %v1501 = vpop.f32.mrf.mxu0
    %1502 = vdwg.mxu0
    %1503 = vmatpush.bf16.msra.mxu0 %v1436
    %1504 = vmatpush.bf16.msra.mxu0 %v1435
    %1505 = vmatpush.bf16.msra.mxu0 %v1434
    %1506 = vmatpush.bf16.msra.mxu0 %v1433
    %1507 = vmatpush.bf16.msra.mxu0 %v1432
    %1508 = vmatpush.bf16.msra.mxu0 %v1431
    %1509 = vmatpush.bf16.msra.mxu0 %v1430
    %1510 = vmatpush.bf16.msra.mxu0 %v1429
    %1511 = vmatmul.bf16.gmra.mxu0 %v1215
    %v1512 = vpop.f32.mrf.mxu0
    %v1513 = vadd.f32 %v1500, %v1512
    %v1514 = vpop.f32.mrf.mxu0
    %1515 = vdwg.mxu0
    %1516 = vmatpush.bf16.msra.mxu0 %v1444
    %1517 = vmatpush.bf16.msra.mxu0 %v1443
    %1518 = vmatpush.bf16.msra.mxu0 %v1442
    %1519 = vmatpush.bf16.msra.mxu0 %v1441
    %1520 = vmatpush.bf16.msra.mxu0 %v1440
    %1521 = vmatpush.bf16.msra.mxu0 %v1439
    %1522 = vmatpush.bf16.msra.mxu0 %v1438
    %1523 = vmatpush.bf16.msra.mxu0 %v1437
    %1524 = vmatmul.bf16.gmra.mxu0 %v1216
    %v1525 = vpop.f32.mrf.mxu0
    %v1526 = vadd.f32 %v1513, %v1525
    %v1527 = vpop.f32.mrf.mxu0
    %1528 = vdwg.mxu0
    %1529 = vst [vmem:[#allocation13] sm:$0xff] %v1526
    // Predicated region
    $region54: #{tpu_custom_call.1} parent=1 // pred_check
      _
    $region55: #{tpu_custom_call.1} parent=1 // pred_check_branch
      %1531 = sbr.rel (0) target = $region57
    $region56: #{tpu_custom_call.1} parent=1 // pred_region
      %1533 = vsyncadd [#allocation4], 0
      %s1535 = sshll.u32 [#allocation13], 4
      %s1536 = int_to_ptr.vmem [resolvable:$true] %s1535
      %s1537 = sshll.u32 %s7, 4
      %s1538 = int_to_ptr.hbm [resolvable:$true] %s1537
      %1540 = dma.vmem_to_hbm [thread:$0]  %s1536, 128, %s1538, [#allocation4]
    $region57: #{tpu_custom_call.1} parent=1 // pred_fallthru
      _
    // Predicated region
    $region58: #{tpu_custom_call.1} parent=1 // pred_check
      _
    $region59: #{tpu_custom_call.1} parent=1 // pred_check_branch
      %1542 = sbr.rel (0) target = $region61
    $region60: #{tpu_custom_call.1} parent=1 // pred_region
      %1544 = dma.done [#allocation4], 128
    $region61: #{tpu_custom_call.1} parent=1 // pred_fallthru
      _
    %1545 = vsyncpa [#allocation3], 1
    %1546 = vsyncpa [#allocation6], 1
    %1547 = vsyncpa [#allocation9], 1
    %1548 = vsyncpa [#allocation12], 1
    %1549 = vsyncpa [#allocation4], 1

</llo_original>
